<compile_context>
chip_gen: v6e
topology: v6e:2x2x1
jax: 0.10.0
libtpu: 0.0.40
codegen_flags: <defaults>
</compile_context>

<pallas_src>
import functools

import jax
import jax.numpy as jnp
from jax.experimental import pallas as pl
from jax.experimental.pallas import tpu as pltpu


def _round_up(x, m):
    return ((x + m - 1) // m) * m


def _masked_softmax_rows(s, pos_w, denom_keep, s_for_max, pos_cnt=None):
    """Per-row mean log-prob over positives; log(denom) folded into reduction."""
    row_max = jnp.max(s_for_max, axis=1, keepdims=True)          # incl. self (as torch)
    logits = s - row_max
    denom = jnp.sum(jnp.where(denom_keep, jnp.exp(logits), 0.0),
                    axis=1, keepdims=True)                        # self/pad excluded
    log_denom = jnp.log(denom)
    w_sum = jnp.sum(pos_w, axis=1, keepdims=True)
    w_logit_sum = jnp.sum(pos_w * logits, axis=1, keepdims=True)
    if pos_cnt is None:
        pos_cnt = w_sum                                           # binary mask: count == sum
    cnt_safe = jnp.maximum(pos_cnt, 1.0)                          # NaN guard (clamp)
    # == (pos_w * (logits - log_denom)).sum / cnt, without a [TA, N] temporary.
    return (w_logit_sum - w_sum * log_denom) / cnt_safe           # [TA, 1]


def _supcon_labels_kernel(row_lab_ref, col_lab_ref, anchor_ref, contrast_ref,
                          out_ref, *, inv_temp, tile_rows, n_rows, n_cols,
                          has_row_pad):
    """Fast path: positives / self masks rebuilt in-kernel from labels+iota."""
    r0 = pl.program_id(0) * tile_rows
    a = anchor_ref[...]                                           # [TA, Dp]
    c = contrast_ref[...]                                         # [Np, Dp]
    # Contract the feature (last) dim of both operands directly -> no transpose.
    s = jax.lax.dot_general(
        a, c, dimension_numbers=(((1,), (1,)), ((), ())),
        preferred_element_type=jnp.float32) * inv_temp            # [TA, Np] f32

    ta, np_ = s.shape
    row_ids = r0 + jax.lax.broadcasted_iota(jnp.int32, (ta, np_), 0)
    col_ids = jax.lax.broadcasted_iota(jnp.int32, (ta, np_), 1)
    not_self = row_ids != col_ids
    if n_cols < np_:                                              # static: padded cols
        col_valid = col_ids < n_cols
        denom_keep = jnp.logical_and(not_self, col_valid)
        s_for_max = jnp.where(col_valid, s, -jnp.inf)
    else:
        denom_keep = not_self
        s_for_max = s

    pos = jnp.logical_and(row_lab_ref[...] == col_lab_ref[...], denom_keep)
    if has_row_pad:                                               # static: padded rows
        pos = jnp.logical_and(pos, row_ids < n_rows)
    pos_f = pos.astype(jnp.float32)

    out_ref[...] = _masked_softmax_rows(s, pos_f, denom_keep, s_for_max)


def _supcon_mask_kernel(mask_pos_ref, anchor_ref, contrast_ref, out_ref, *,
                        inv_temp, tile_rows, n_cols):
    """Fallback path for an explicit (possibly asymmetric / weighted) mask."""
    r0 = pl.program_id(0) * tile_rows
    a = anchor_ref[...]
    c = contrast_ref[...]
    s = jax.lax.dot_general(
        a, c, dimension_numbers=(((1,), (1,)), ((), ())),
        preferred_element_type=jnp.float32) * inv_temp

    ta, np_ = s.shape
    row_ids = r0 + jax.lax.broadcasted_iota(jnp.int32, (ta, np_), 0)
    col_ids = jax.lax.broadcasted_iota(jnp.int32, (ta, np_), 1)
    not_self = row_ids != col_ids
    if n_cols < np_:
        col_valid = col_ids < n_cols
        denom_keep = jnp.logical_and(not_self, col_valid)
        s_for_max = jnp.where(col_valid, s, -jnp.inf)
    else:
        denom_keep = not_self
        s_for_max = s

    pos_w = mask_pos_ref[...]                                     # self/pad already zeroed
    pos_cnt = jnp.sum((pos_w > 0).astype(jnp.float32), axis=1, keepdims=True)
    out_ref[...] = _masked_softmax_rows(s, pos_w, denom_keep, s_for_max,
                                        pos_cnt=pos_cnt)


def supcon_loss(features, labels=None, mask=None, *, temperature=1.0,
                contrast_mode='all', base_temperature=1.0,
                compute_dtype=jnp.bfloat16):
    """JAX/Pallas port of SupConLoss.forward."""
    if features.ndim < 3:
        raise ValueError('`features` needs to be [bsz, n_views, ...]')
    if features.ndim > 3:
        features = features.reshape(features.shape[0], features.shape[1], -1)
    bsz, n_views, d = features.shape
    if labels is not None and mask is not None:
        raise ValueError('Cannot define both `labels` and `mask`')

    contrast_count = n_views
    # torch.cat(torch.unbind(features, dim=1), dim=0)  (view-major ordering)
    contrast_feature = jnp.transpose(features, (1, 0, 2)).reshape(bsz * n_views, d)
    if contrast_mode == 'one':
        anchor_feature = features[:, 0]
        anchor_count = 1
    elif contrast_mode == 'all':
        anchor_feature = contrast_feature
        anchor_count = contrast_count
    else:
        raise ValueError('Unknown mode: {}'.format(contrast_mode))

    A = bsz * anchor_count
    N = bsz * contrast_count

    # Lane-dense, tiled geometry.
    cdt = jnp.dtype(compute_dtype)
    d_pad = max(128, _round_up(d, 128))
    n_pad = max(128, _round_up(N, 128))
    ta = min(128, _round_up(A, 8))          # v7x-friendly row-tile
    a_pad = _round_up(A, ta)
    num_tiles = a_pad // ta

    def _pad2(x, rows, cols, cval=0):
        return jnp.pad(x, ((0, rows - x.shape[0]), (0, cols - x.shape[1])),
                       constant_values=cval)

    anchor_p = _pad2(anchor_feature.astype(cdt), a_pad, d_pad)
    contrast_p = _pad2(contrast_feature.astype(cdt), n_pad, d_pad)

    itemsize = cdt.itemsize
    cost = pl.CostEstimate(
        flops=2 * a_pad * n_pad * d_pad,
        transcendentals=a_pad * n_pad + 2 * a_pad,
        bytes_accessed=int((a_pad + n_pad) * d_pad * itemsize + 8 * (a_pad + n_pad)))
    vmem_bytes = (n_pad * d_pad * itemsize          # resident contrast
                  + 2 * ta * d_pad * itemsize       # double-buffered anchor tiles
                  + 2 * ta * n_pad * 4              # mask block (fallback) / headroom
                  + 8 * ta * n_pad * 4)             # in-kernel f32/bool temporaries
    vmem_limit = int(min(max(vmem_bytes * 1.25, 32 << 20), 60 << 20))
    cparams = pltpu.CompilerParams(dimension_semantics=("parallel",),
                                   vmem_limit_bytes=vmem_limit)

    anchor_spec = pl.BlockSpec((ta, d_pad), lambda i: (i, 0))
    contrast_spec = pl.BlockSpec((n_pad, d_pad), lambda i: (0, 0))
    out_shape = jax.ShapeDtypeStruct((a_pad, 1), jnp.float32)
    out_spec = pl.BlockSpec((ta, 1), lambda i: (i, 0))
    inv_temp = float(1.0 / temperature)

    if mask is None:
        if labels is None:
            lab = jnp.arange(bsz, dtype=jnp.int32)          # SimCLR: eye(bsz)
        else:
            lab = jnp.asarray(labels).reshape(-1).astype(jnp.int32)
            if lab.shape[0] != bsz:
                raise ValueError('Num of labels does not match num of features')
        row_lab = _pad2(jnp.tile(lab, anchor_count).reshape(A, 1), a_pad, 1, cval=-1)
        col_lab = _pad2(jnp.tile(lab, contrast_count).reshape(1, N), 1, n_pad, cval=-1)

        kernel = functools.partial(
            _supcon_labels_kernel, inv_temp=inv_temp, tile_rows=ta,
            n_rows=A, n_cols=N, has_row_pad=(a_pad > A))
        per_row = pl.pallas_call(
            kernel,
            grid=(num_tiles,),
            in_specs=[pl.BlockSpec((ta, 1), lambda i: (i, 0)),
                      pl.BlockSpec((1, n_pad), lambda i: (0, 0)),
                      anchor_spec, contrast_spec],
            out_specs=out_spec,
            out_shape=out_shape,
            compiler_params=cparams,
            cost_estimate=cost,
        )(row_lab, col_lab, anchor_p, contrast_p)
    else:
        mask = jnp.asarray(mask, jnp.float32)
        mask_big = jnp.tile(mask, (anchor_count, contrast_count))          # [A, N]
        rid = jax.lax.broadcasted_iota(jnp.int32, (A, N), 0)
        cid = jax.lax.broadcasted_iota(jnp.int32, (A, N), 1)
        mask_pos = _pad2(mask_big * (rid != cid).astype(jnp.float32), a_pad, n_pad)

        kernel = functools.partial(_supcon_mask_kernel, inv_temp=inv_temp,
                                   tile_rows=ta, n_cols=N)
        per_row = pl.pallas_call(
            kernel,
            grid=(num_tiles,),
            in_specs=[pl.BlockSpec((ta, n_pad), lambda i: (i, 0)),
                      anchor_spec, contrast_spec],
            out_specs=out_spec,
            out_shape=out_shape,
            compiler_params=cparams,
            cost_estimate=cost,
        )(mask_pos, anchor_p, contrast_p)

    # Padded rows produce exactly 0, so the mean divides by the true A.
    scale = -(temperature / base_temperature)
    return scale * jnp.sum(per_row) / A


def _supcon_loss_ref(features, labels=None, *, temperature=1.0,
                     contrast_mode='all', base_temperature=1.0):
    """Pure-JAX reference (mirrors the PyTorch code) for verification."""
    bsz, n_views, d = features.shape
    if labels is None:
        mask = jnp.eye(bsz, dtype=jnp.float32)
    else:
        labels = labels.reshape(-1, 1)
        mask = (labels == labels.T).astype(jnp.float32)
    contrast_feature = jnp.transpose(features, (1, 0, 2)).reshape(
        bsz * n_views, d).astype(jnp.float32)
    anchor_feature = contrast_feature
    anchor_count = contrast_count = n_views
    adc = anchor_feature @ contrast_feature.T / temperature
    logits = adc - jnp.max(adc, axis=1, keepdims=True)
    mask = jnp.tile(mask, (anchor_count, contrast_count))
    A = bsz * anchor_count
    logits_mask = 1.0 - jnp.eye(A, dtype=jnp.float32)
    mask = mask * logits_mask
    exp_logits = jnp.exp(logits) * logits_mask
    log_prob = logits - jnp.log(exp_logits.sum(1, keepdims=True))
    mean_log_prob_pos = (mask * log_prob).sum(1) / (mask > 0).sum(1)
    loss = -(temperature / base_temperature) * mean_log_prob_pos
    return loss.reshape(anchor_count, bsz).mean()


if __name__ == "__main__":
    key = jax.random.PRNGKey(0)
    kf, kl = jax.random.split(key)
    bsz, n_views, dim = 8, 2, 128
    features = jax.random.normal(kf, (bsz, n_views, dim), dtype=jnp.float32)
    # L2-normalize along the feature dim (standard for SupCon inputs).
    features = features / jnp.linalg.norm(features, axis=-1, keepdims=True)
    labels = jax.random.randint(kl, (bsz,), 0, 3)

    # f32 MXU path: tight check against the pure-JAX reference.
    loss_f32 = jax.block_until_ready(
        supcon_loss(features, compute_dtype=jnp.float32))
    loss_sup_f32 = jax.block_until_ready(
        supcon_loss(features, labels=labels, compute_dtype=jnp.float32))
    # Explicit-mask fallback path (same math as the supervised labels path).
    mask = (labels.reshape(-1, 1) == labels.reshape(1, -1)).astype(jnp.float32)
    loss_mask_f32 = jax.block_until_ready(
        supcon_loss(features, mask=mask, compute_dtype=jnp.float32))
    # bf16 MXU fast path (default): loose check.
    loss_bf16 = jax.block_until_ready(supcon_loss(features))

    ref = _supcon_loss_ref(features)
    ref_sup = _supcon_loss_ref(features, labels=labels)
    assert jnp.allclose(loss_f32, ref, atol=1e-4, rtol=1e-4), (loss_f32, ref)
    assert jnp.allclose(loss_sup_f32, ref_sup, atol=1e-4, rtol=1e-4), (loss_sup_f32, ref_sup)
    assert jnp.allclose(loss_mask_f32, ref_sup, atol=1e-4, rtol=1e-4), (loss_mask_f32, ref_sup)
    assert jnp.allclose(loss_bf16, ref, atol=3e-2, rtol=3e-2), (loss_bf16, ref)

    print("KERNEL_OK")
</pallas_src>

<mosaic_0001>
module attributes {stable_mosaic.version = 11 : i64} {
  func.func @_supcon_labels_kernel(%arg0: i32, %arg1: memref<16x1xi32, #tpu.memory_space<vmem>>, %arg2: memref<1x128xi32, #tpu.memory_space<vmem>>, %arg3: memref<16x128xf32, #tpu.memory_space<vmem>>, %arg4: memref<128x128xf32, #tpu.memory_space<vmem>>, %arg5: memref<16x1xf32, #tpu.memory_space<vmem>>) attributes {dimension_semantics = [#tpu.dimension_semantics<parallel>], iteration_bounds = array<i64: 1>, scalar_prefetch = 0 : i64, scratch_operands = 0 : i64, tpu.core_type = #tpu.core_type<tc>, window_params = [{transform_indices = @transform_0, window_bounds = array<i64: 16, 1>}, {pipeline_mode = #tpu.pipeline_mode<synchronous>, transform_indices = @transform_1, window_bounds = array<i64: 1, 128>}, {transform_indices = @transform_2, window_bounds = array<i64: 16, 128>}, {pipeline_mode = #tpu.pipeline_mode<synchronous>, transform_indices = @transform_3, window_bounds = array<i64: 128, 128>}, {transform_indices = @transform_4, window_bounds = array<i64: 16, 1>}]} {
    %c16_i32 = arith.constant 16 : i32
    %0 = arith.muli %arg0, %c16_i32 : i32
    %c0 = arith.constant 0 : index
    %c0_0 = arith.constant 0 : index
    %1 = vector.load %arg3[%c0, %c0_0] : memref<16x128xf32, #tpu.memory_space<vmem>>, vector<16x128xf32>
    %c0_1 = arith.constant 0 : index
    %c0_2 = arith.constant 0 : index
    %2 = vector.load %arg4[%c0_1, %c0_2] : memref<128x128xf32, #tpu.memory_space<vmem>>, vector<128x128xf32>
    %cst = arith.constant dense<0.000000e+00> : vector<16x128xf32>
    %3 = tpu.matmul %1, %2, %cst {dimension_numbers = #tpu.dot_dimension_numbers<[1], [1], [0], [0], [0, 0, 1, 0], [], []>} : vector<16x128xf32>, vector<128x128xf32>, vector<16x128xf32> -> vector<16x128xf32>
    %cst_3 = arith.constant 1.000000e+00 : f32
    %4 = vector.broadcast %cst_3 : f32 to vector<16x128xf32>
    %5 = arith.mulf %3, %4 : vector<16x128xf32>
    %6 = tpu.iota {dimensions = array<i32: 0>} : vector<16x128xi32>
    %7 = vector.broadcast %0 : i32 to vector<16x128xi32>
    %8 = arith.addi %7, %6 : vector<16x128xi32>
    %9 = tpu.iota {dimensions = array<i32: 1>} : vector<16x128xi32>
    %10 = arith.cmpi ne, %8, %9 : vector<16x128xi32>
    %c16_i32_4 = arith.constant 16 : i32
    %11 = vector.broadcast %c16_i32_4 : i32 to vector<16x128xi32>
    %12 = arith.cmpi slt, %9, %11 : vector<16x128xi32>
    %13 = arith.andi %10, %12 : vector<16x128xi1>
    %cst_5 = arith.constant 0xFF800000 : f32
    %14 = vector.broadcast %cst_5 : f32 to vector<16x128xf32>
    %15 = arith.select %12, %5, %14 : vector<16x128xi1>, vector<16x128xf32>
    %c0_6 = arith.constant 0 : index
    %c0_7 = arith.constant 0 : index
    %16 = vector.load %arg1[%c0_6, %c0_7] : memref<16x1xi32, #tpu.memory_space<vmem>>, vector<16x1xi32>
    %c0_8 = arith.constant 0 : index
    %c0_9 = arith.constant 0 : index
    %17 = vector.load %arg2[%c0_8, %c0_9] : memref<1x128xi32, #tpu.memory_space<vmem>>, vector<1x128xi32>
    %18 = vector.broadcast %16 : vector<16x1xi32> to vector<16x128xi32>
    %19 = vector.broadcast %17 : vector<1x128xi32> to vector<16x128xi32>
    %20 = arith.cmpi eq, %18, %19 : vector<16x128xi32>
    %21 = arith.andi %20, %13 : vector<16x128xi1>
    %22 = arith.extui %21 : vector<16x128xi1> to vector<16x128xi32>
    %23 = arith.sitofp %22 : vector<16x128xi32> to vector<16x128xf32>
    %cst_10 = arith.constant dense<0xFF800000> : vector<16xf32>
    %24 = vector.multi_reduction <maximumf>, %15, %cst_10 [1] : vector<16x128xf32> to vector<16xf32>
    %25 = vector.shape_cast %24 : vector<16xf32> to vector<16x1xf32>
    %26 = vector.broadcast %25 : vector<16x1xf32> to vector<16x128xf32>
    %27 = arith.subf %5, %26 : vector<16x128xf32>
    %28 = math.exp %27 : vector<16x128xf32>
    %cst_11 = arith.constant 0.000000e+00 : f32
    %29 = vector.broadcast %cst_11 : f32 to vector<16x128xf32>
    %30 = arith.select %13, %28, %29 : vector<16x128xi1>, vector<16x128xf32>
    %cst_12 = arith.constant dense<0.000000e+00> : vector<16xf32>
    %31 = vector.multi_reduction <add>, %30, %cst_12 [1] : vector<16x128xf32> to vector<16xf32>
    %32 = vector.shape_cast %31 : vector<16xf32> to vector<16x1xf32>
    %33 = math.log %32 : vector<16x1xf32>
    %cst_13 = arith.constant dense<0.000000e+00> : vector<16xf32>
    %34 = vector.multi_reduction <add>, %23, %cst_13 [1] : vector<16x128xf32> to vector<16xf32>
    %35 = vector.shape_cast %34 : vector<16xf32> to vector<16x1xf32>
    %36 = arith.mulf %23, %27 : vector<16x128xf32>
    %cst_14 = arith.constant dense<0.000000e+00> : vector<16xf32>
    %37 = vector.multi_reduction <add>, %36, %cst_14 [1] : vector<16x128xf32> to vector<16xf32>
    %38 = vector.shape_cast %37 : vector<16xf32> to vector<16x1xf32>
    %cst_15 = arith.constant 1.000000e+00 : f32
    %39 = vector.broadcast %cst_15 : f32 to vector<16x1xf32>
    %40 = arith.maximumf %35, %39 : vector<16x1xf32>
    %41 = arith.mulf %35, %33 : vector<16x1xf32>
    %42 = arith.subf %38, %41 : vector<16x1xf32>
    %43 = arith.divf %42, %40 : vector<16x1xf32>
    %c0_16 = arith.constant 0 : index
    %c0_17 = arith.constant 0 : index
    %44 = vector.load %arg5[%c0_16, %c0_17] : memref<16x1xf32, #tpu.memory_space<vmem>>, vector<16x1xf32>
    tpu.vector_store %arg5[%c0_16, %c0_17], %43 {strides = array<i32>} : memref<16x1xf32, #tpu.memory_space<vmem>>, vector<16x1xf32>,
    return
  }
  func.func @transform_0(%arg0: i32) -> (i32, i32) {
    %c0_i32 = arith.constant 0 : i32
    %c0_i32_0 = arith.constant 0 : i32
    return %arg0, %c0_i32 : i32, i32
  }
  func.func @transform_1(%arg0: i32) -> (i32, i32) {
    %c0_i32 = arith.constant 0 : i32
    %c0_i32_0 = arith.constant 0 : i32
    %c0_i32_1 = arith.constant 0 : i32
    return %c0_i32, %c0_i32_0 : i32, i32
  }
  func.func @transform_2(%arg0: i32) -> (i32, i32) {
    %c0_i32 = arith.constant 0 : i32
    %c0_i32_0 = arith.constant 0 : i32
    return %arg0, %c0_i32 : i32, i32
  }
  func.func @transform_3(%arg0: i32) -> (i32, i32) {
    %c0_i32 = arith.constant 0 : i32
    %c0_i32_0 = arith.constant 0 : i32
    %c0_i32_1 = arith.constant 0 : i32
    return %c0_i32, %c0_i32_0 : i32, i32
  }
  func.func @transform_4(%arg0: i32) -> (i32, i32) {
    %c0_i32 = arith.constant 0 : i32
    %c0_i32_0 = arith.constant 0 : i32
    return %arg0, %c0_i32 : i32, i32
  }
}

</mosaic_0001>

<llo_original>
// kernel: tpu_custom_call.1
$region0: #{tpu_custom_call.1}
  #allocation0 [shape = 'u32[]', space=smem, size = 0x4, offset = 0x4, fixed_abs, tag = 'smem constant byte address 0x4 - core index']
  #allocation1 [shape = 'u32[144,128]{1,0:T(1,128)}', space=vmem, size = 0x12000, scoped, tag = 'internal scratch']
  %s0 = inlined_call_operand.vmem [shape: s32[16,1], index: 0, kind: input, shape index: {}]
  %s1 = inlined_call_operand.vmem [shape: s32[1,128], index: 1, kind: input, shape index: {}]
  %s2 = inlined_call_operand.vmem [shape: f32[16,128], index: 2, kind: input, shape index: {}]
  %s3 = inlined_call_operand.hbm [shape: f32[128,128], index: 3, kind: input, shape index: {}]
  %s4 = inlined_call_operand.vmem [shape: f32[16,1], index: 4, kind: output, shape index: {}]
  %s5 = sld [smem:[#allocation0]]
  $region30: #{tpu_custom_call.1} parent=0
    _
  %s7 = ssub.s32 1, %s5
  %s8 = scalar_select 0, %s7, %s5
  $region1: #{tpu_custom_call.1} parent=0
    #allocation2 [shape = 'u8[65536]{0}', space=vmem, size = 0x10000, scoped, tag = 'input window, operand 3, single buffered']
    #allocation3 [shape = 's32[1]{0}', space=sflag, size = 0x4, scoped, tag = 'scoped memory for tpu_custom_call.1']
    %9 = vsyncpa [#allocation3], 0
    // Predicated region
    $region2: #{tpu_custom_call.1} parent=1 // pred_check
      _
    $region3: #{tpu_custom_call.1} parent=1 // pred_check_branch
      %11 = sbr.rel (0) target = $region5
    $region4: #{tpu_custom_call.1} parent=1 // pred_region
      _
    $region5: #{tpu_custom_call.1} parent=1 // pred_fallthru
      _
    // Predicated region
    $region6: #{tpu_custom_call.1} parent=1 // pred_check
      _
    $region7: #{tpu_custom_call.1} parent=1 // pred_check_branch
      %13 = sbr.rel (0) target = $region9
    $region8: #{tpu_custom_call.1} parent=1 // pred_region
      _
    $region9: #{tpu_custom_call.1} parent=1 // pred_fallthru
      _
    // Predicated region
    $region10: #{tpu_custom_call.1} parent=1 // pred_check
      _
    $region11: #{tpu_custom_call.1} parent=1 // pred_check_branch
      %15 = sbr.rel (0) target = $region13
    $region12: #{tpu_custom_call.1} parent=1 // pred_region
      _
    $region13: #{tpu_custom_call.1} parent=1 // pred_fallthru
      _
    // Predicated region
    $region14: #{tpu_custom_call.1} parent=1 // pred_check
      _
    $region15: #{tpu_custom_call.1} parent=1 // pred_check_branch
      %17 = sbr.rel (0) target = $region17
    $region16: #{tpu_custom_call.1} parent=1 // pred_region
      %s19 = ssub.s32 2048, 2048
      %20 = vsyncadd [#allocation3], %s19
      %s21 = sshll.u32 [#allocation2], 4
      %s22 = int_to_ptr.vmem [resolvable:$true] %s21
      %27 = dma.hbm_to_vmem [thread:$0]  %s3, 2048, %s22, [#allocation3], 128, 128, 8
    $region17: #{tpu_custom_call.1} parent=1 // pred_fallthru
      _
    // Predicated region
    $region18: #{tpu_custom_call.1} parent=1 // pred_check
      _
    $region19: #{tpu_custom_call.1} parent=1 // pred_check_branch
      %29 = sbr.rel (0) target = $region21
    $region20: #{tpu_custom_call.1} parent=1 // pred_region
      %30 = dma.done [#allocation3], 2048
    $region21: #{tpu_custom_call.1} parent=1 // pred_fallthru
      _
    %s31 = smul.u32 0, 16
    %v32 = vld [vmem:[%s2] sm:$0xff]
    %v33 = vld [vmem:[%s2 + $0x8] sm:$0xff]
    %v34 = vld [vmem:[#allocation2] sm:$0xff]
    %v35 = vld [vmem:[#allocation2 + $0x8] sm:$0xff]
    %v36 = vld [vmem:[#allocation2 + $0x10] sm:$0xff]
    %v37 = vld [vmem:[#allocation2 + $0x18] sm:$0xff]
    %v38 = vld [vmem:[#allocation2 + $0x20] sm:$0xff]
    %v39 = vld [vmem:[#allocation2 + $0x28] sm:$0xff]
    %v40 = vld [vmem:[#allocation2 + $0x30] sm:$0xff]
    %v41 = vld [vmem:[#allocation2 + $0x38] sm:$0xff]
    %v42 = vld [vmem:[#allocation2 + $0x40] sm:$0xff]
    %v43 = vld [vmem:[#allocation2 + $0x48] sm:$0xff]
    %v44 = vld [vmem:[#allocation2 + $0x50] sm:$0xff]
    %v45 = vld [vmem:[#allocation2 + $0x58] sm:$0xff]
    %v46 = vld [vmem:[#allocation2 + $0x60] sm:$0xff]
    %v47 = vld [vmem:[#allocation2 + $0x68] sm:$0xff]
    %v48 = vld [vmem:[#allocation2 + $0x70] sm:$0xff]
    %v49 = vld [vmem:[#allocation2 + $0x78] sm:$0xff]
    %50 = vmatprep.subr.mxu0 0.0
    %51 = vmatpush1.xpose.msra.mxu0 %v49
    %52 = vmatprep.subr.mxu0 0.0
    %53 = vmatpush1.xpose.msra.mxu0 %v48
    %54 = vmatprep.subr.mxu0 0.0
    %55 = vmatpush1.xpose.msra.mxu0 %v47
    %56 = vmatprep.subr.mxu0 0.0
    %57 = vmatpush1.xpose.msra.mxu0 %v46
    %58 = vmatprep.subr.mxu0 0.0
    %59 = vmatpush1.xpose.msra.mxu0 %v45
    %60 = vmatprep.subr.mxu0 0.0
    %61 = vmatpush1.xpose.msra.mxu0 %v44
    %62 = vmatprep.subr.mxu0 0.0
    %63 = vmatpush1.xpose.msra.mxu0 %v43
    %64 = vmatprep.subr.mxu0 0.0
    %65 = vmatpush1.xpose.msra.mxu0 %v42
    %66 = vmatprep.subr.mxu0 0.0
    %67 = vmatpush1.xpose.msra.mxu0 %v41
    %68 = vmatprep.subr.mxu0 0.0
    %69 = vmatpush1.xpose.msra.mxu0 %v40
    %70 = vmatprep.subr.mxu0 0.0
    %71 = vmatpush1.xpose.msra.mxu0 %v39
    %72 = vmatprep.subr.mxu0 0.0
    %73 = vmatpush1.xpose.msra.mxu0 %v38
    %74 = vmatprep.subr.mxu0 0.0
    %75 = vmatpush1.xpose.msra.mxu0 %v37
    %76 = vmatprep.subr.mxu0 0.0
    %77 = vmatpush1.xpose.msra.mxu0 %v36
    %78 = vmatprep.subr.mxu0 0.0
    %79 = vmatpush1.xpose.msra.mxu0 %v35
    %80 = vmatprep.subr.mxu0 0.0
    %81 = vmatpush1.xpose.msra.mxu0 %v34
    %82 = vmatprep.subr.mxu0 0.0
    %83 = vmatpush2.xpose.msra.mxu0 0.0
    %84 = vmatprep.subr.mxu0 0.0
    %85 = vmatpush2.xpose.msra.mxu0 0.0
    %86 = vmatprep.subr.mxu0 0.0
    %87 = vmatpush2.xpose.msra.mxu0 0.0
    %88 = vmatprep.subr.mxu0 0.0
    %89 = vmatpush2.xpose.msra.mxu0 0.0
    %90 = vmatprep.subr.mxu0 0.0
    %91 = vmatpush2.xpose.msra.mxu0 0.0
    %92 = vmatprep.subr.mxu0 0.0
    %93 = vmatpush2.xpose.msra.mxu0 0.0
    %94 = vmatprep.subr.mxu0 0.0
    %95 = vmatpush2.xpose.msra.mxu0 0.0
    %96 = vmatprep.subr.mxu0 0.0
    %97 = vmatpush2.xpose.msra.mxu0 0.0
    %98 = vmatprep.subr.mxu0 0.0
    %99 = vmatpush2.xpose.msra.mxu0 0.0
    %100 = vmatprep.subr.mxu0 0.0
    %101 = vmatpush2.xpose.msra.mxu0 0.0
    %102 = vmatprep.subr.mxu0 0.0
    %103 = vmatpush2.xpose.msra.mxu0 0.0
    %104 = vmatprep.subr.mxu0 0.0
    %105 = vmatpush2.xpose.msra.mxu0 0.0
    %106 = vmatprep.subr.mxu0 0.0
    %107 = vmatpush2.xpose.msra.mxu0 0.0
    %108 = vmatprep.subr.mxu0 0.0
    %109 = vmatpush2.xpose.msra.mxu0 0.0
    %110 = vmatprep.subr.mxu0 0.0
    %111 = vmatpush2.xpose.msra.mxu0 0.0
    %112 = vmatprep.subr.mxu0 0.0
    %113 = vmatpush2.xpose.msra.mxu0 0.0
    %114 = vmatprep.mubr.f32.mxu0 0.0
    %115 = vmatmul.mubr.f32.gmra.mxu0 %v32
    %v116 = vpop.f32.mrf.mxu0
    %v117 = vadd.f32 0.0, %v116
    %v118 = vpop.f32.mrf.mxu0
    %119 = vmatprep.mubr.f32.mxu0 0.0
    %120 = vmatmul.mubr.f32.gmra.mxu0 %v33
    %v121 = vpop.f32.mrf.mxu0
    %v122 = vadd.f32 0.0, %v121
    %v123 = vpop.f32.mrf.mxu0
    %124 = vdwg.mxu0
    %v125 = vlaneseq
    %v126 = vshrl.u32 %v125, 7
    %v127 = vadd.s32 %v126, 8
    %v128 = vstv %s31
    %v129 = vadd.s32 %v128, %v126
    %v130 = vadd.s32 %v128, %v127
    %v131 = vlaneseq
    %v132 = vand.u32 %v131, 127
    %vm133 = vcmp.ne.s32.totalorder %v129, %v132
    %vm134 = vcmp.ne.s32.totalorder %v130, %v132
    %vm135 = vcmp.lt.s32.totalorder %v132, 16
    %vm136 = vmand %vm133, %vm135
    %vm137 = vmand %vm134, %vm135
    %v138 = vsel %vm135, %v117, -inf
    %v139 = vsel %vm135, %v122, -inf
    %v140 = vld [vmem:[%s0] sm:$0xff]
    %v141 = vld [vmem:[%s0 + $0x8] sm:$0xff]
    %v142 = vld [vmem:[%s1] sm:$0x1]
    %143 = vset.pattern.permute.xlu0 0
    %144 = vperm.xlu0 %143, %v140
    %v145 = vpop.permute.xlu0 %144
    %146 = vset.pattern.permute.xlu0 0
    %147 = vperm.xlu0 %146, %v141
    %v148 = vpop.permute.xlu0 %147
    %v149 = vlaneseq
    %v150 = vshrl.u32 %v149, 7
    %v151 = vsub.s32 0, %v150
    %v152 = vrot.slane %v142, %v151
    %vm153 = vcmp.eq.s32.totalorder %v145, %v152
    %vm154 = vcmp.eq.s32.totalorder %v148, %v152
    %vm155 = vmand %vm153, %vm136
    %vm156 = vmand %vm154, %vm137
    %v157 = vsel %vm155, 1, 0
    %v158 = vsel %vm156, 1, 0
    %v159 = vcvt.s32.f32 %v157
    %v160 = vcvt.s32.f32 %v158
    %161 = vmax.xlane.f32.xlu0 %v138
    %v162 = vpop.xlane.xlu0 %161
    %163 = vmax.xlane.f32.xlu0 %v139
    %v164 = vpop.xlane.xlu0 %163
    %v165 = vsub.f32 %v117, %v162
    %v166 = vsub.f32 %v122, %v164
    %v167 = vmul.f32 %v165, 1.442695
    %v168 = vpow.pop %v167
    %v169 = vmul.f32 %v166, 1.442695
    %v170 = vpow.pop %v169
    %v171 = vsel %vm136, %v168, 0.0
    %v172 = vsel %vm137, %v170, 0.0
    %173 = vadd.xlane.f32.xlu0 %v171
    %v174 = vpop.xlane.xlu0 %173
    %175 = vadd.xlane.f32.xlu0 %v172
    %v176 = vpop.xlane.xlu0 %175
    %v177 = vlog2.pop %v174
    %v178 = vmul.f32 %v177, 0.6931472
    %v179 = vlog2.pop %v176
    %v180 = vmul.f32 %v179, 0.6931472
    %181 = vadd.xlane.f32.xlu0 %v159
    %v182 = vpop.xlane.xlu0 %181
    %183 = vadd.xlane.f32.xlu0 %v160
    %v184 = vpop.xlane.xlu0 %183
    %v185 = vmul.f32 %v159, %v165
    %v186 = vmul.f32 %v160, %v166
    %187 = vadd.xlane.f32.xlu0 %v185
    %v188 = vpop.xlane.xlu0 %187
    %189 = vadd.xlane.f32.xlu0 %v186
    %v190 = vpop.xlane.xlu0 %189
    %v191 = vmax.f32 %v182, 1.0
    %v192 = vmax.f32 %v184, 1.0
    %v193 = vmul.f32 %v182, %v178
    %v194 = vmul.f32 %v184, %v180
    %v195 = vsub.f32 %v188, %v193
    %v196 = vsub.f32 %v190, %v194
    %v197 = vrcp.pop %v191
    %v198 = vmul.f32 %v195, %v197
    %v199 = vrcp.pop %v192
    %v200 = vmul.f32 %v196, %v199
    %vm201 = vcmask 7168
    %202 = vst.msk [vmem:[%s4] sm:$0xff] %vm201, %v198
    %203 = vst.msk [vmem:[%s4 + $0x8] sm:$0xff] %vm201, %v200
    // Predicated region
    $region22: #{tpu_custom_call.1} parent=1 // pred_check
      _
    $region23: #{tpu_custom_call.1} parent=1 // pred_check_branch
      %205 = sbr.rel (0) target = $region25
    $region24: #{tpu_custom_call.1} parent=1 // pred_region
      _
    $region25: #{tpu_custom_call.1} parent=1 // pred_fallthru
      _
    // Predicated region
    $region26: #{tpu_custom_call.1} parent=1 // pred_check
      _
    $region27: #{tpu_custom_call.1} parent=1 // pred_check_branch
      %207 = sbr.rel (0) target = $region29
    $region28: #{tpu_custom_call.1} parent=1 // pred_region
      _
    $region29: #{tpu_custom_call.1} parent=1 // pred_fallthru
      _
    %208 = vsyncpa [#allocation3], 1

</llo_original>
